<compile_context>
chip_gen: v6e
topology: v6e:2x2x1
jax: 0.10.0
libtpu: 0.0.40
codegen_flags: <defaults>
</compile_context>

<pallas_src>
import jax
import jax.numpy as jnp
from jax.experimental import pallas as pl
from jax.experimental.pallas import tpu as pltpu


def _extract_groups(one_hot_index_map, D):
    """Validate and convert the index map into sorted (start, size) ranges."""
    groups = []
    for _, idx in one_hot_index_map.items():
        idx = [int(i) for i in idx]
        assert len(idx) >= 1, "empty feature group"
        start, size = idx[0], len(idx)
        # TODO(synk): non-contiguous index groups would need a static boolean
        # lane mask (or in-kernel gather); only contiguous ranges supported here.
        assert idx == list(range(start, start + size)), \
            "kernel supports contiguous feature-index groups only"
        assert 0 <= start and start + size <= D, "group indices out of range"
        groups.append((start, size))
    groups.sort()
    # Overlapping groups would need the reference's sequential in-place
    # semantics; this kernel computes every group from the original x.
    for (s0, n0), (s1, _) in zip(groups, groups[1:]):
        assert s0 + n0 <= s1, "overlapping feature groups are not supported"
    return tuple(groups)


def _choose_tile_b(B, D, dtype, vmem_budget_bytes=32 << 20, max_rows_cap=4096):
    """Largest batch tile that (a) divides B, (b) is sublane aligned,
    (c) fits the scoped-VMEM budget, preferring a grid of >= 2 steps."""
    itemsize = jnp.dtype(dtype).itemsize
    sub = {4: 8, 2: 16, 1: 32}.get(itemsize, 8)     # sublane packing multiple
    # per-row VMEM cost: double-buffered in + out tiles plus ~4 f32 temporaries.
    per_row = (2 * 2 * itemsize + 4 * 4) * D
    max_rows = int(min(max(vmem_budget_bytes // per_row, sub), max_rows_cap))
    best = None
    for t in range(min(B, max_rows), 0, -1):
        if B % t:
            continue
        if t % sub and t != B:
            continue
        if best is None:
            best = t
        if t <= B // 2:          # grid >= 2 -> shards across v7x's 2 TensorCores
            return t
    return best if best is not None else B


def _make_kernel(groups):
    """groups: tuple of sorted, non-overlapping (start, size) channel ranges."""

    def kernel(inv_tau_ref, x_ref, o_ref):
        inv_tau = inv_tau_ref[0]
        x = x_ref[...]
        # One full-width cast + scale, reused by every group (bf16-friendly).
        xt = x.astype(jnp.float32) * inv_tau
        lane = jax.lax.broadcasted_iota(jnp.int32, x.shape, 1)
        out = x                                   # passthrough channels
        # TODO(synk): for many groups over a wide D, batch all group reductions
        # via a one-hot [D, G] matmul on the MXU instead of this unrolled loop.
        for (start, size) in groups:
            gmask = (lane >= start) & (lane < start + size)
            seg = jnp.where(gmask, xt, -jnp.inf)
            m = jnp.max(seg, axis=-1, keepdims=True)
            e = jnp.exp(seg - m)                  # masked lanes: exp(-inf) == 0
            s = jnp.sum(e, axis=-1, keepdims=True)
            r = pl.reciprocal(s, approx=True)     # EUP vrcp
            r = r * (2.0 - s * r)                 # one Newton step -> ~1e-7 rel err
            out = jnp.where(gmask, (e * r).astype(out.dtype), out)
        o_ref[...] = out                          # single lane-dense full store

    return kernel


def feature_softmax(x, one_hot_index_map, tau=1.0, *, tile_b=None,
                    buffer_count=None, donate_x=False):
    """Pallas implementation of FeatureSoftmax.forward.

    x: [B, D] float array.  one_hot_index_map: dict feature_name -> list of
    (contiguous) channel indices.  Set donate_x=True to alias x to the output
    (in-place, like the PyTorch module); x is invalid afterwards.
    """
    B, D = x.shape
    groups = _extract_groups(one_hot_index_map, D)

    if tile_b is None:
        tile_b = _choose_tile_b(B, D, x.dtype)
    else:
        assert B % tile_b == 0, "batch must be divisible by the batch tile"
        assert tile_b % 8 == 0 or tile_b == B, "tile_b must be sublane aligned"

    itemsize = jnp.dtype(x.dtype).itemsize
    tile_bytes = tile_b * D * itemsize
    # double-buffered in+out tiles + f32 working temporaries + headroom,
    # capped at 48 MiB (safe under v7x's 64 MiB physical VMEM).
    vmem_limit = int(min(48 << 20,
                         max(16 << 20,
                             2 * 2 * tile_bytes + 4 * tile_b * D * 4 + (2 << 20))))

    kernel = _make_kernel(groups)
    inv_tau_arr = jnp.asarray([1.0 / float(tau)], dtype=jnp.float32)

    if buffer_count is None:
        x_spec = pl.BlockSpec((tile_b, D), lambda i: (i, 0))
    else:  # deeper pipelining (e.g. 3 on v7x if DMA latency is exposed)
        x_spec = pl.BlockSpec((tile_b, D), lambda i: (i, 0),
                              pipeline_mode=pl.Buffered(buffer_count))

    extra = {"input_output_aliases": {1: 0}} if donate_x else {}

    call = pl.pallas_call(
        kernel,
        out_shape=jax.ShapeDtypeStruct((B, D), x.dtype),
        grid=(B // tile_b,),
        in_specs=[
            pl.BlockSpec(memory_space=pltpu.MemorySpace.SMEM),   # 1/tau scalar
            x_spec,                                              # x batch tile
        ],
        out_specs=pl.BlockSpec((tile_b, D), lambda i: (i, 0)),
        compiler_params=pltpu.CompilerParams(
            dimension_semantics=("parallel",),
            vmem_limit_bytes=vmem_limit),
        **extra,
    )

    if donate_x:
        # Donate x at the jit boundary so the pallas-level alias is a true
        # in-place update (no extra HBM output allocation).
        return jax.jit(call, donate_argnums=(1,))(inv_tau_arr, x)
    return call(inv_tau_arr, x)


def feature_softmax_ref(x, one_hot_index_map, tau=1.0):
    """Pure-JAX reference mirroring the PyTorch forward."""
    out = x
    for _, idx in one_hot_index_map.items():
        idx = jnp.asarray(list(idx))
        seg = out[:, idx] / tau
        out = out.at[:, idx].set(jax.nn.softmax(seg, axis=-1).astype(out.dtype))
    return out


if __name__ == "__main__":
    # Small synthetic setup consistent with the module: a [B, D] feature tensor
    # where three contiguous channel groups are "one-hot" features.
    B, D = 16, 32
    one_hot_index_map = {
        "cat_a": list(range(0, 8)),
        "cat_b": list(range(8, 20)),
        "cat_c": list(range(20, 24)),
        # channels 24..31 are continuous features and are passed through.
    }
    tau = 0.7

    key = jax.random.PRNGKey(0)
    x = jax.random.normal(key, (B, D), dtype=jnp.float32)

    ref = feature_softmax_ref(x, one_hot_index_map, tau=tau)

    out = feature_softmax(x, one_hot_index_map, tau=tau)
    out = jax.block_until_ready(out)
    assert out.shape == x.shape and out.dtype == x.dtype
    assert jnp.allclose(out, ref, atol=1e-5, rtol=1e-5), "mismatch vs reference"

    # In-place variant (aliases/donates x, matching the PyTorch module's
    # in-place update).  x must not be used after this call.
    out2 = feature_softmax(x, one_hot_index_map, tau=tau, donate_x=True)
    out2 = jax.block_until_ready(out2)
    assert jnp.allclose(out2, ref, atol=1e-5, rtol=1e-5), "in-place path mismatch"

    print("KERNEL_OK")
</pallas_src>

<mosaic_0001>
module attributes {stable_mosaic.version = 11 : i64} {
  func.func @kernel(%arg0: i32, %arg1: memref<1xf32, #tpu.memory_space<smem>>, %arg2: memref<8x32xf32, #tpu.memory_space<vmem>>, %arg3: memref<8x32xf32, #tpu.memory_space<vmem>>) attributes {dimension_semantics = [#tpu.dimension_semantics<parallel>], iteration_bounds = array<i64: 2>, scalar_prefetch = 0 : i64, scratch_operands = 0 : i64, tpu.core_type = #tpu.core_type<tc>, window_params = [{transform_indices = @transform_0, window_bounds = array<i64: 1>}, {transform_indices = @transform_1, window_bounds = array<i64: 8, 32>}, {transform_indices = @transform_2, window_bounds = array<i64: 8, 32>}]} {
    %c0 = arith.constant 0 : index
    %0 = memref.load %arg1[%c0] : memref<1xf32, #tpu.memory_space<smem>>
    %c0_0 = arith.constant 0 : index
    %c0_1 = arith.constant 0 : index
    %1 = vector.load %arg2[%c0_0, %c0_1] : memref<8x32xf32, #tpu.memory_space<vmem>>, vector<8x32xf32>
    %2 = vector.broadcast %0 : f32 to vector<8x32xf32>
    %3 = arith.mulf %1, %2 : vector<8x32xf32>
    %4 = tpu.iota {dimensions = array<i32: 1>} : vector<8x32xi32>
    %c0_i32 = arith.constant 0 : i32
    %5 = vector.broadcast %c0_i32 : i32 to vector<8x32xi32>
    %6 = arith.cmpi sge, %4, %5 : vector<8x32xi32>
    %c8_i32 = arith.constant 8 : i32
    %7 = vector.broadcast %c8_i32 : i32 to vector<8x32xi32>
    %8 = arith.cmpi slt, %4, %7 : vector<8x32xi32>
    %9 = arith.andi %6, %8 : vector<8x32xi1>
    %cst = arith.constant 0xFF800000 : f32
    %10 = vector.broadcast %cst : f32 to vector<8x32xf32>
    %11 = arith.select %9, %3, %10 : vector<8x32xi1>, vector<8x32xf32>
    %cst_2 = arith.constant dense<0xFF800000> : vector<8xf32>
    %12 = vector.multi_reduction <maximumf>, %11, %cst_2 [1] : vector<8x32xf32> to vector<8xf32>
    %13 = vector.shape_cast %12 : vector<8xf32> to vector<8x1xf32>
    %14 = vector.broadcast %13 : vector<8x1xf32> to vector<8x32xf32>
    %15 = arith.subf %11, %14 : vector<8x32xf32>
    %16 = math.exp %15 : vector<8x32xf32>
    %cst_3 = arith.constant dense<0.000000e+00> : vector<8xf32>
    %17 = vector.multi_reduction <add>, %16, %cst_3 [1] : vector<8x32xf32> to vector<8xf32>
    %18 = vector.shape_cast %17 : vector<8xf32> to vector<8x1xf32>
    %19 = tpu.reciprocal %18 {approx = true} : vector<8x1xf32> -> vector<8x1xf32>
    %20 = arith.mulf %18, %19 : vector<8x1xf32>
    %cst_4 = arith.constant 2.000000e+00 : f32
    %21 = vector.broadcast %cst_4 : f32 to vector<8x1xf32>
    %22 = arith.subf %21, %20 : vector<8x1xf32>
    %23 = arith.mulf %19, %22 : vector<8x1xf32>
    %24 = vector.broadcast %23 : vector<8x1xf32> to vector<8x32xf32>
    %25 = arith.mulf %16, %24 : vector<8x32xf32>
    %26 = arith.select %9, %25, %1 : vector<8x32xi1>, vector<8x32xf32>
    %c8_i32_5 = arith.constant 8 : i32
    %27 = vector.broadcast %c8_i32_5 : i32 to vector<8x32xi32>
    %28 = arith.cmpi sge, %4, %27 : vector<8x32xi32>
    %c20_i32 = arith.constant 20 : i32
    %29 = vector.broadcast %c20_i32 : i32 to vector<8x32xi32>
    %30 = arith.cmpi slt, %4, %29 : vector<8x32xi32>
    %31 = arith.andi %28, %30 : vector<8x32xi1>
    %cst_6 = arith.constant 0xFF800000 : f32
    %32 = vector.broadcast %cst_6 : f32 to vector<8x32xf32>
    %33 = arith.select %31, %3, %32 : vector<8x32xi1>, vector<8x32xf32>
    %cst_7 = arith.constant dense<0xFF800000> : vector<8xf32>
    %34 = vector.multi_reduction <maximumf>, %33, %cst_7 [1] : vector<8x32xf32> to vector<8xf32>
    %35 = vector.shape_cast %34 : vector<8xf32> to vector<8x1xf32>
    %36 = vector.broadcast %35 : vector<8x1xf32> to vector<8x32xf32>
    %37 = arith.subf %33, %36 : vector<8x32xf32>
    %38 = math.exp %37 : vector<8x32xf32>
    %cst_8 = arith.constant dense<0.000000e+00> : vector<8xf32>
    %39 = vector.multi_reduction <add>, %38, %cst_8 [1] : vector<8x32xf32> to vector<8xf32>
    %40 = vector.shape_cast %39 : vector<8xf32> to vector<8x1xf32>
    %41 = tpu.reciprocal %40 {approx = true} : vector<8x1xf32> -> vector<8x1xf32>
    %42 = arith.mulf %40, %41 : vector<8x1xf32>
    %cst_9 = arith.constant 2.000000e+00 : f32
    %43 = vector.broadcast %cst_9 : f32 to vector<8x1xf32>
    %44 = arith.subf %43, %42 : vector<8x1xf32>
    %45 = arith.mulf %41, %44 : vector<8x1xf32>
    %46 = vector.broadcast %45 : vector<8x1xf32> to vector<8x32xf32>
    %47 = arith.mulf %38, %46 : vector<8x32xf32>
    %48 = arith.select %31, %47, %26 : vector<8x32xi1>, vector<8x32xf32>
    %c20_i32_10 = arith.constant 20 : i32
    %49 = vector.broadcast %c20_i32_10 : i32 to vector<8x32xi32>
    %50 = arith.cmpi sge, %4, %49 : vector<8x32xi32>
    %c24_i32 = arith.constant 24 : i32
    %51 = vector.broadcast %c24_i32 : i32 to vector<8x32xi32>
    %52 = arith.cmpi slt, %4, %51 : vector<8x32xi32>
    %53 = arith.andi %50, %52 : vector<8x32xi1>
    %cst_11 = arith.constant 0xFF800000 : f32
    %54 = vector.broadcast %cst_11 : f32 to vector<8x32xf32>
    %55 = arith.select %53, %3, %54 : vector<8x32xi1>, vector<8x32xf32>
    %cst_12 = arith.constant dense<0xFF800000> : vector<8xf32>
    %56 = vector.multi_reduction <maximumf>, %55, %cst_12 [1] : vector<8x32xf32> to vector<8xf32>
    %57 = vector.shape_cast %56 : vector<8xf32> to vector<8x1xf32>
    %58 = vector.broadcast %57 : vector<8x1xf32> to vector<8x32xf32>
    %59 = arith.subf %55, %58 : vector<8x32xf32>
    %60 = math.exp %59 : vector<8x32xf32>
    %cst_13 = arith.constant dense<0.000000e+00> : vector<8xf32>
    %61 = vector.multi_reduction <add>, %60, %cst_13 [1] : vector<8x32xf32> to vector<8xf32>
    %62 = vector.shape_cast %61 : vector<8xf32> to vector<8x1xf32>
    %63 = tpu.reciprocal %62 {approx = true} : vector<8x1xf32> -> vector<8x1xf32>
    %64 = arith.mulf %62, %63 : vector<8x1xf32>
    %cst_14 = arith.constant 2.000000e+00 : f32
    %65 = vector.broadcast %cst_14 : f32 to vector<8x1xf32>
    %66 = arith.subf %65, %64 : vector<8x1xf32>
    %67 = arith.mulf %63, %66 : vector<8x1xf32>
    %68 = vector.broadcast %67 : vector<8x1xf32> to vector<8x32xf32>
    %69 = arith.mulf %60, %68 : vector<8x32xf32>
    %70 = arith.select %53, %69, %48 : vector<8x32xi1>, vector<8x32xf32>
    %c0_15 = arith.constant 0 : index
    %c0_16 = arith.constant 0 : index
    %71 = vector.load %arg3[%c0_15, %c0_16] : memref<8x32xf32, #tpu.memory_space<vmem>>, vector<8x32xf32>
    tpu.vector_store %arg3[%c0_15, %c0_16], %70 {strides = array<i32>} : memref<8x32xf32, #tpu.memory_space<vmem>>, vector<8x32xf32>,
    return
  }
  func.func @transform_0(%arg0: i32) -> i32 {
    %c0_i32 = arith.constant 0 : i32
    %c0_i32_0 = arith.constant 0 : i32
    return %c0_i32 : i32
  }
  func.func @transform_1(%arg0: i32) -> (i32, i32) {
    %c0_i32 = arith.constant 0 : i32
    %c0_i32_0 = arith.constant 0 : i32
    return %arg0, %c0_i32 : i32, i32
  }
  func.func @transform_2(%arg0: i32) -> (i32, i32) {
    %c0_i32 = arith.constant 0 : i32
    %c0_i32_0 = arith.constant 0 : i32
    return %arg0, %c0_i32 : i32, i32
  }
}

</mosaic_0001>

<llo_original>
// kernel: tpu_custom_call.1
$region0: #{tpu_custom_call.1}
  #allocation0 [shape = 'u32[]', space=smem, size = 0x4, offset = 0x4, fixed_abs, tag = 'smem constant byte address 0x4 - core index']
  #allocation1 [shape = 'u32[144,128]{1,0:T(1,128)}', space=vmem, size = 0x12000, scoped, tag = 'internal scratch']
  #allocation2 [shape = 'f32[1]{0:T(128)S(6)}', space=smem, size = 0x200, scoped, tag = 'scoped memory for tpu_custom_call.1']
  %s0 = inlined_call_operand.<no memory space> [shape: f32[1], index: 0, kind: input, shape index: {}]
  %s1 = inlined_call_operand.hbm [shape: f32[16,32], index: 1, kind: input, shape index: {}]
  %s2 = inlined_call_operand.hbm [shape: f32[16,32], index: 2, kind: output, shape index: {}]
  %s3 = sld [smem:[#allocation0]]
  $region45: #{tpu_custom_call.1} parent=0
    _
  %s5 = ssub.s32 1, %s3
  %s6 = scalar_select 0, %s5, %s3
  %7 = sst [smem:[#allocation2]] %s0
  $region1: #{tpu_custom_call.1} parent=0
    #allocation3 [shape = 'u8[8192]{0}', space=vmem, size = 0x2000, scoped, tag = 'input window, operand 1']
    #allocation4 [shape = 's32[2]{0}', space=sflag, size = 0x8, scoped, tag = 'scoped memory for tpu_custom_call.1']
    #allocation5 [shape = 's32[2]{0}', space=sflag, size = 0x8, scoped, tag = 'scoped memory for tpu_custom_call.1']
    #allocation6 [shape = 'u8[8192]{0}', space=vmem, size = 0x2000, scoped, tag = 'output window, operand 0']
    %8 = vsyncpa [#allocation4], 0
    %s9 = scalar_lea.sflag [#allocation4], 1
    %10 = vsyncpa %s9, 0
    %11 = vsyncpa [#allocation5], 0
    %s12 = scalar_lea.sflag [#allocation5], 1
    %13 = vsyncpa %s12, 0
    loop: start=0, step=1, limit=4
    $region2: #{tpu_custom_call.1} parent=1 // loop_pre_header
      _
    $region3: #{tpu_custom_call.1} parent=1 // loop_header
      %s15 = sphi 0, %s19
      %p16 = scmp.ge.s32.totalorder %s15, 4
      %s23 = sphi 0, %s23
      %s25 = sphi 0, %s23
      %s26 = sphi 0, %s25
      %s40 = sphi 0, %s26
      %s46 = sphi 0, %s48
      %s49 = sphi 0, %s46
      %s50 = sphi 0, %s49
      %s66 = sphi 0, %s50
      %s72 = sphi 0, %s74
      %s75 = sphi 0, %s72
      %s76 = sphi 0, %s75
      %s92 = sphi 0, %s76
    $region4: #{tpu_custom_call.1} parent=1 // loop_header_branch
      %18 = sbr.rel (%p16) target = $region8
    $region5: #{tpu_custom_call.1} parent=1 // loop_body
      %s20 = ssub.s32 %s15, 1
      %s21 = ssub.s32 %s15, 2
      %s22 = sadd.s32 %s15, 1
      %s24 = sadd.s32 %s23, 1
      %p27 = scmp.eq.s32.totalorder %s15, 1
      %p28 = scmp.ne.s32.totalorder %s23, %s25
      %p29 = scmp.eq.s32.totalorder %s15, 0
      %p30 = por %p28, %p29
      %p31 = scmp.ne.s32.totalorder %s23, %s25
      %p32 = scmp.eq.s32.totalorder %s20, 1
      %p33 = por %p31, %p32
      %p34 = scmp.ne.s32.totalorder %s25, %s26
      %p35 = scmp.eq.s32.totalorder %s20, 0
      %p36 = por %p34, %p35
      %p37 = scmp.ne.s32.totalorder %s25, %s26
      %p38 = scmp.eq.s32.totalorder %s21, 1
      %p39 = por %p37, %p38
      %p41 = scmp.ne.s32.totalorder %s26, %s40
      %p42 = scmp.eq.s32.totalorder %s21, 0
      %p43 = por %p41, %p42
      %s44 = ssub.s32 %s15, %s22
      %p45 = scmp.eq.s32.totalorder %s44, 0
      %s47 = sadd.s32 %s46, 1
      %s48 = scalar_select %p45, %s46, %s47
      %p51 = pneg %p45
      %p52 = scmp.eq.s32.totalorder %s15, 1
      %p53 = por %p51, %p52
      %p54 = scmp.ne.s32.totalorder %s46, %s49
      %p55 = scmp.eq.s32.totalorder %s15, 0
      %p56 = por %p54, %p55
      %p57 = scmp.ne.s32.totalorder %s46, %s49
      %p58 = scmp.eq.s32.totalorder %s20, 1
      %p59 = por %p57, %p58
      %p60 = scmp.ne.s32.totalorder %s49, %s50
      %p61 = scmp.eq.s32.totalorder %s20, 0
      %p62 = por %p60, %p61
      %p63 = scmp.ne.s32.totalorder %s49, %s50
      %p64 = scmp.eq.s32.totalorder %s21, 1
      %p65 = por %p63, %p64
      %p67 = scmp.ne.s32.totalorder %s50, %s66
      %p68 = scmp.eq.s32.totalorder %s21, 0
      %p69 = por %p67, %p68
      %s70 = ssub.s32 %s15, %s22
      %p71 = scmp.eq.s32.totalorder %s70, 0
      %s73 = sadd.s32 %s72, 1
      %s74 = scalar_select %p71, %s72, %s73
      %p77 = pneg %p71
      %p78 = scmp.eq.s32.totalorder %s15, 1
      %p79 = por %p77, %p78
      %p80 = scmp.ne.s32.totalorder %s72, %s75
      %p81 = scmp.eq.s32.totalorder %s15, 0
      %p82 = por %p80, %p81
      %p83 = scmp.ne.s32.totalorder %s72, %s75
      %p84 = scmp.eq.s32.totalorder %s20, 1
      %p85 = por %p83, %p84
      %p86 = scmp.ne.s32.totalorder %s75, %s76
      %p87 = scmp.eq.s32.totalorder %s20, 0
      %p88 = por %p86, %p87
      %p89 = scmp.ne.s32.totalorder %s75, %s76
      %p90 = scmp.eq.s32.totalorder %s21, 1
      %p91 = por %p89, %p90
      %p93 = scmp.ne.s32.totalorder %s76, %s92
      %p94 = scmp.eq.s32.totalorder %s21, 0
      %p95 = por %p93, %p94
      %p96 = scmp.le.s32.totalorder 1, %s15
      %p97 = scmp.lt.s32.totalorder %s15, 3
      %p98 = pnand %p96, %p97
      %p99 = pneg %p98
      // Predicated region
      $region9: #{tpu_custom_call.1} parent=5 // pred_check
        _
      $region10: #{tpu_custom_call.1} parent=5 // pred_check_branch
        %101 = sbr.rel (%p98) target = $region12
      $region11: #{tpu_custom_call.1} parent=5 // pred_region
        %s102 = ssub.s32 %s15, 1
        // Predicated region
        $region13: #{tpu_custom_call.1} parent=11 // pred_check
          %p103 = pneg %p36
        $region14: #{tpu_custom_call.1} parent=11 // pred_check_branch
          %105 = sbr.rel (%p103) target = $region16
        $region15: #{tpu_custom_call.1} parent=11 // pred_region
          _
        $region16: #{tpu_custom_call.1} parent=11 // pred_fallthru
          _
      $region12: #{tpu_custom_call.1} parent=5 // pred_fallthru
        _
      %p106 = scmp.lt.s32.totalorder %s15, 2
      // Predicated region
      $region17: #{tpu_custom_call.1} parent=5 // pred_check
        %p107 = pneg %p106
      $region18: #{tpu_custom_call.1} parent=5 // pred_check_branch
        %109 = sbr.rel (%p107) target = $region20
      $region19: #{tpu_custom_call.1} parent=5 // pred_region
        // Predicated region
        $region21: #{tpu_custom_call.1} parent=19 // pred_check
          %p110 = pneg %p56
        $region22: #{tpu_custom_call.1} parent=19 // pred_check_branch
          %112 = sbr.rel (%p110) target = $region24
        $region23: #{tpu_custom_call.1} parent=19 // pred_region
          %s113 = sand.u32 %s46, 1
          %s114 = scalar_lea.sflag [#allocation4], %s113
          %s115 = sand.u32 %s46, 1
          %s116 = smul.addr %s115, 8
          %s117 = scalar_lea.vmem [#allocation3], %s116
          %s119 = ssub.s32 128, 128
          %120 = vsyncadd %s114, %s119
          %s121 = smul.addr %s15, 128
          %s122 = scalar_lea.hbm %s1, %s121
          %s124 = sshll.u32 %s117, 4
          %s125 = int_to_ptr.vmem [resolvable:$true] %s124
          %127 = dma.hbm_to_vmem [thread:$0]  %s122, 128, %s125, %s114
        $region24: #{tpu_custom_call.1} parent=19 // pred_fallthru
          _
      $region20: #{tpu_custom_call.1} parent=5 // pred_fallthru
        _
      %p128 = scmp.le.s32.totalorder 1, %s15
      %p129 = scmp.lt.s32.totalorder %s15, 3
      %p130 = pnand %p128, %p129
      %p131 = pneg %p130
      // Predicated region
      $region25: #{tpu_custom_call.1} parent=5 // pred_check
        _
      $region26: #{tpu_custom_call.1} parent=5 // pred_check_branch
        %133 = sbr.rel (%p130) target = $region28
      $region27: #{tpu_custom_call.1} parent=5 // pred_region
        %s134 = ssub.s32 %s15, 1
        %s135 = sand.u32 %s49, 1
        %s136 = scalar_lea.sflag [#allocation4], %s135
        %s137 = sand.u32 %s49, 1
        %s138 = smul.addr %s137, 8
        %s139 = scalar_lea.vmem [#allocation3], %s138
        // Predicated region
        $region29: #{tpu_custom_call.1} parent=27 // pred_check
          %p140 = pneg %p62
        $region30: #{tpu_custom_call.1} parent=27 // pred_check_branch
          %142 = sbr.rel (%p140) target = $region32
        $region31: #{tpu_custom_call.1} parent=27 // pred_region
          %143 = dma.done %s136, 128
        $region32: #{tpu_custom_call.1} parent=27 // pred_fallthru
          _
        %p144 = pneg %p36
        %p145 = pneg %p33
        %s146 = sand.u32 %s49, 1
        %s147 = scalar_lea.sflag [#allocation4], %s146
        %s148 = sand.u32 %s49, 1
        %s149 = smul.addr %s148, 8
        %s150 = scalar_lea.vmem [#allocation3], %s149
        %p151 = pneg %p62
        %p152 = pneg %p59
        %p153 = pneg %p88
        %p154 = pneg %p85
        %s155 = sand.u32 %s75, 1
        %s156 = scalar_lea.sflag [#allocation5], %s155
        %s157 = sand.u32 %s75, 1
        %s158 = smul.addr %s157, 8
        %s159 = scalar_lea.vmem [#allocation6], %s158
        %s160 = sld [smem:[#allocation2]]
        %v161 = vld [vmem:[%s139] sm:$0xff]
        %v162 = vstv %s160
        %v163 = vmul.f32 %v161, %v162
        %v164 = vlaneseq
        %v165 = vand.u32 %v164, 127
        %vm166 = vcmp.ge.s32.totalorder %v165, 0
        %vm167 = vcmp.lt.s32.totalorder %v165, 8
        %vm168 = vmand %vm166, %vm167
        %v169 = vsel %vm168, %v163, -inf
        %vm170 = vcmask 261120
        %v171 = vsel %vm170, %v169, -inf
        %172 = vmax.xlane.f32.xlu0 %v171
        %v173 = vpop.xlane.xlu0 %172
        %v174 = vsub.f32 %v169, %v173
        %v175 = vmul.f32 %v174, 1.442695
        %v176 = vpow.pop %v175
        %v177 = vsel %vm170, %v176, 0.0
        %178 = vadd.xlane.f32.xlu0 %v177
        %v179 = vpop.xlane.xlu0 %178
        %v180 = vrcp.pop %v179
        %v181 = vmul.f32 %v179, %v180
        %v182 = vsub.f32 2.0, %v181
        %v183 = vmul.f32 %v180, %v182
        %v184 = vmul.f32 %v176, %v183
        %v185 = vsel %vm168, %v184, %v161
        %vm186 = vcmp.ge.s32.totalorder %v165, 8
        %vm187 = vcmp.lt.s32.totalorder %v165, 20
        %vm188 = vmand %vm186, %vm187
        %v189 = vsel %vm188, %v163, -inf
        %v190 = vsel %vm170, %v189, -inf
        %191 = vmax.xlane.f32.xlu0 %v190
        %v192 = vpop.xlane.xlu0 %191
        %v193 = vsub.f32 %v189, %v192
        %v194 = vmul.f32 %v193, 1.442695
        %v195 = vpow.pop %v194
        %v196 = vsel %vm170, %v195, 0.0
        %197 = vadd.xlane.f32.xlu0 %v196
        %v198 = vpop.xlane.xlu0 %197
        %v199 = vrcp.pop %v198
        %v200 = vmul.f32 %v198, %v199
        %v201 = vsub.f32 2.0, %v200
        %v202 = vmul.f32 %v199, %v201
        %v203 = vmul.f32 %v195, %v202
        %v204 = vsel %vm188, %v203, %v185
        %vm205 = vcmp.ge.s32.totalorder %v165, 20
        %vm206 = vcmp.lt.s32.totalorder %v165, 24
        %vm207 = vmand %vm205, %vm206
        %v208 = vsel %vm207, %v163, -inf
        %v209 = vsel %vm170, %v208, -inf
        %210 = vmax.xlane.f32.xlu0 %v209
        %v211 = vpop.xlane.xlu0 %210
        %v212 = vsub.f32 %v208, %v211
        %v213 = vmul.f32 %v212, 1.442695
        %v214 = vpow.pop %v213
        %v215 = vsel %vm170, %v214, 0.0
        %216 = vadd.xlane.f32.xlu0 %v215
        %v217 = vpop.xlane.xlu0 %216
        %v218 = vrcp.pop %v217
        %v219 = vmul.f32 %v217, %v218
        %v220 = vsub.f32 2.0, %v219
        %v221 = vmul.f32 %v218, %v220
        %v222 = vmul.f32 %v214, %v221
        %v223 = vsel %vm207, %v222, %v204
        %224 = vst.msk [vmem:[%s159] sm:$0xff] %vm170, %v223
        %s225 = sand.u32 %s75, 1
        %s226 = scalar_lea.sflag [#allocation5], %s225
        %s227 = sand.u32 %s75, 1
        %s228 = smul.addr %s227, 8
        %s229 = scalar_lea.vmem [#allocation6], %s228
        // Predicated region
        $region33: #{tpu_custom_call.1} parent=27 // pred_check
          %p230 = pneg %p85
        $region34: #{tpu_custom_call.1} parent=27 // pred_check_branch
          %232 = sbr.rel (%p230) target = $region36
        $region35: #{tpu_custom_call.1} parent=27 // pred_region
          %s234 = ssub.s32 128, 128
          %235 = vsyncadd %s226, %s234
          %s236 = smul.addr %s20, 128
          %s237 = scalar_lea.hbm %s2, %s236
          %s239 = sshll.u32 %s229, 4
          %s240 = int_to_ptr.vmem [resolvable:$true] %s239
          %242 = dma.vmem_to_hbm [thread:$0]  %s240, 128, %s237, %s226
        $region36: #{tpu_custom_call.1} parent=27 // pred_fallthru
          _
      $region28: #{tpu_custom_call.1} parent=5 // pred_fallthru
        _
      %p243 = scmp.le.s32.totalorder 2, %s15
      // Predicated region
      $region37: #{tpu_custom_call.1} parent=5 // pred_check
        %p244 = pneg %p243
      $region38: #{tpu_custom_call.1} parent=5 // pred_check_branch
        %246 = sbr.rel (%p244) target = $region40
      $region39: #{tpu_custom_call.1} parent=5 // pred_region
        %s247 = ssub.s32 %s15, 2
        // Predicated region
        $region41: #{tpu_custom_call.1} parent=39 // pred_check
          %p248 = pneg %p91
        $region42: #{tpu_custom_call.1} parent=39 // pred_check_branch
          %250 = sbr.rel (%p248) target = $region44
        $region43: #{tpu_custom_call.1} parent=39 // pred_region
          %s251 = sand.u32 %s76, 1
          %s252 = scalar_lea.sflag [#allocation5], %s251
          %s253 = sand.u32 %s76, 1
          %s254 = smul.addr %s253, 8
          %s255 = scalar_lea.vmem [#allocation6], %s254
          %256 = dma.done %s252, 128
        $region44: #{tpu_custom_call.1} parent=39 // pred_fallthru
          _
      $region40: #{tpu_custom_call.1} parent=5 // pred_fallthru
        _
    $region6: #{tpu_custom_call.1} parent=1 // loop_footer
      %s19 = sadd.s32 1, %s15
    $region7: #{tpu_custom_call.1} parent=1 // loop_footer_branch
      %14 = sbr.rel target = $region3
    $region8: #{tpu_custom_call.1} parent=1 // loop_exit
      _
    %257 = vsyncpa [#allocation4], 1
    %s258 = scalar_lea.sflag [#allocation4], 1
    %259 = vsyncpa %s258, 1
    %260 = vsyncpa [#allocation5], 1
    %s261 = scalar_lea.sflag [#allocation5], 1
    %262 = vsyncpa %s261, 1

</llo_original>
